<compile_context>
chip_gen: v5e
topology: v5e:2x2
jax: 0.10.0
libtpu: 0.0.40
codegen_flags: <defaults>
</compile_context>

<pallas_src>
import jax
import jax.numpy as jnp
from jax.experimental import pallas as pl
from jax.experimental.pallas import tpu as pltpu


def _luong_attn_kernel(enc_ref, h_ref, out_ref):
    # enc_ref: (TB, S, H)  encoder outputs for this batch tile
    # h_ref:   (TB, H)     last-layer decoder hidden state for this tile
    # out_ref: (TB, S)     softmax attention weights over the sequence
    enc = enc_ref[...]                                  # native dtype (bf16 stays bf16)
    h = h_ref[...]

    # scores[b, s] = sum_h enc[b, s, h] * h[b, h]
    # Multiply in native dtype, accumulate the H-reduction in f32
    # (VPU mul + XLU lane reduce; intentionally NOT an MXU matvec).
    scores = jnp.sum(enc * h[:, None, :], axis=-1, dtype=jnp.float32)   # (TB, S)

    # Numerically-stable softmax over the sequence axis (PyTorch dim=1), in f32.
    m = jnp.max(scores, axis=-1, keepdims=True)
    e = jnp.exp(scores - m)
    denom = jnp.sum(e, axis=-1, keepdims=True)
    out_ref[...] = (e * pl.reciprocal(denom, approx=True)).astype(out_ref.dtype)


def _pick_batch_tile(B, S, H, dtype_bytes, enc_budget_bytes=24 * 1024 * 1024):
    """Batch rows processed per grid step.

    Sized so the double-buffered encoder slab stays within a conservative
    VMEM budget (fits v7x's 64 MiB as well as v5e/v6e's 128 MiB), rounded to
    a multiple of 8 (sublane alignment for the (TB, S) output / (TB, H)
    hidden blocks), and capped to leave >= 2 grid steps when B is large.
    """
    per_row = 2 * S * H * dtype_bytes          # double-buffered encoder rows
    tb = enc_budget_bytes // per_row
    tb = min(tb, pl.cdiv(B, 2))                # >= 2 grid steps (v7x: 2 TCs)
    tb = (tb // 8) * 8                         # sublane-align block second-last dims
    if tb < 8 or tb >= B:
        return B                               # tiny batch: one full-extent block
    return tb


def luong_attention(hidden, encoder_outputs):
    """hidden: (num_layers, B, H); encoder_outputs: (B, S, H) -> (B, S)."""
    num_layers, B_h, H_h = hidden.shape
    B, S, H = encoder_outputs.shape
    assert (B_h, H_h) == (B, H)

    dtype_bytes = jnp.dtype(encoder_outputs.dtype).itemsize
    tb = _pick_batch_tile(B, S, H, dtype_bytes)

    cost = pl.CostEstimate(
        flops=2 * B * S * H,
        transcendentals=B * S,
        bytes_accessed=(B * S * H + B * H + B * S) * dtype_bytes,
    )

    return pl.pallas_call(
        _luong_attn_kernel,
        out_shape=jax.ShapeDtypeStruct((B, S), encoder_outputs.dtype),
        grid_spec=pltpu.PrefetchScalarGridSpec(
            num_scalar_prefetch=0,
            grid=(pl.cdiv(B, tb),),
            in_specs=[
                # (TB, S, H): full S/H extents satisfy the (8,128) tiling rule.
                pl.BlockSpec((tb, S, H), lambda b: (b, 0, 0)),
                # Fold hidden[-1] into the BlockSpec: squeeze the layer dim and
                # DMA only the last layer's (TB, H) slab.
                pl.BlockSpec((None, tb, H), lambda b: (num_layers - 1, b, 0)),
            ],
            out_specs=pl.BlockSpec((tb, S), lambda b: (b, 0)),
        ),
        compiler_params=pltpu.CompilerParams(
            dimension_semantics=("parallel",),
            vmem_limit_bytes=48 * 1024 * 1024,
        ),
        cost_estimate=cost,
    )(encoder_outputs, hidden)


if __name__ == "__main__":
    # Small deterministic shapes: num_layers=2, batch=2, seq=8, hidden=32.
    key = jax.random.PRNGKey(0)
    k1, k2, k3, k4 = jax.random.split(key, 4)

    num_layers, B, S, H = 2, 2, 8, 32

    hidden = jax.random.normal(k1, (num_layers, B, H), dtype=jnp.float32)
    encoder_outputs = jax.random.normal(k2, (B, S, H), dtype=jnp.float32)

    # Deterministic init of the (unused-in-forward) nn.Linear(H, H) params.
    attn_W = jax.random.normal(k3, (H, H), dtype=jnp.float32) * (1.0 / jnp.sqrt(H))
    attn_b = jax.random.normal(k4, (H,), dtype=jnp.float32) * 0.01
    del attn_W, attn_b  # declared in __init__ but not used by forward()

    out = luong_attention(hidden, encoder_outputs)
    out = jax.block_until_ready(out)

    # Pure-JAX reference (same math as the PyTorch forward).
    scores_ref = jnp.einsum("bsh,bh->bs", encoder_outputs, hidden[-1])
    ref = jax.nn.softmax(scores_ref, axis=1)
    assert out.shape == (B, S)
    # approx=True reciprocal (EUP) -> slightly loosened tolerance.
    assert jnp.allclose(out, ref, atol=2e-3, rtol=2e-3)

    print("KERNEL_OK")
</pallas_src>

<mosaic_0001>
module attributes {stable_mosaic.version = 11 : i64} {
  func.func @_luong_attn_kernel(%arg0: i32, %arg1: memref<2x8x32xf32, #tpu.memory_space<vmem>>, %arg2: memref<1x2x32xf32, #tpu.memory_space<vmem>>, %arg3: memref<2x8xf32, #tpu.memory_space<vmem>>) attributes {dimension_semantics = [#tpu.dimension_semantics<parallel>], iteration_bounds = array<i64: 1>, scalar_prefetch = 0 : i64, scratch_operands = 0 : i64, tpu.core_type = #tpu.core_type<tc>, window_params = [{transform_indices = @transform_0, window_bounds = array<i64: 2, 8, 32>}, {transform_indices = @transform_1, window_bounds = array<i64: 1, 2, 32>}, {transform_indices = @transform_2, window_bounds = array<i64: 2, 8>}]} {
    %c0 = arith.constant 0 : index
    %c0_0 = arith.constant 0 : index
    %c0_1 = arith.constant 0 : index
    %0 = vector.load %arg1[%c0, %c0_0, %c0_1] : memref<2x8x32xf32, #tpu.memory_space<vmem>>, vector<2x8x32xf32>
    %c0_2 = arith.constant 0 : index
    %c0_3 = arith.constant 0 : index
    %c0_4 = arith.constant 0 : index
    %1 = vector.load %arg2[%c0_2, %c0_3, %c0_4] : memref<1x2x32xf32, #tpu.memory_space<vmem>>, vector<1x2x32xf32>
    %2 = vector.shape_cast %1 : vector<1x2x32xf32> to vector<2x32xf32>
    %3 = vector.shape_cast %2 : vector<2x32xf32> to vector<2x1x32xf32>
    %4 = vector.broadcast %3 : vector<2x1x32xf32> to vector<2x8x32xf32>
    %5 = arith.mulf %0, %4 : vector<2x8x32xf32>
    %cst = arith.constant dense<0.000000e+00> : vector<2x8xf32>
    %6 = vector.multi_reduction <add>, %5, %cst [2] : vector<2x8x32xf32> to vector<2x8xf32>
    %cst_5 = arith.constant dense<0xFF800000> : vector<2xf32>
    %7 = vector.multi_reduction <maximumf>, %6, %cst_5 [1] : vector<2x8xf32> to vector<2xf32>
    %8 = vector.shape_cast %7 : vector<2xf32> to vector<2x1xf32>
    %9 = vector.broadcast %8 : vector<2x1xf32> to vector<2x8xf32>
    %10 = arith.subf %6, %9 : vector<2x8xf32>
    %11 = math.exp %10 : vector<2x8xf32>
    %cst_6 = arith.constant dense<0.000000e+00> : vector<2xf32>
    %12 = vector.multi_reduction <add>, %11, %cst_6 [1] : vector<2x8xf32> to vector<2xf32>
    %13 = vector.shape_cast %12 : vector<2xf32> to vector<2x1xf32>
    %14 = tpu.reciprocal %13 {approx = true} : vector<2x1xf32> -> vector<2x1xf32>
    %15 = vector.broadcast %14 : vector<2x1xf32> to vector<2x8xf32>
    %16 = arith.mulf %11, %15 : vector<2x8xf32>
    %c0_7 = arith.constant 0 : index
    %c0_8 = arith.constant 0 : index
    %17 = vector.load %arg3[%c0_7, %c0_8] : memref<2x8xf32, #tpu.memory_space<vmem>>, vector<2x8xf32>
    tpu.vector_store %arg3[%c0_7, %c0_8], %16 {strides = array<i32>} : memref<2x8xf32, #tpu.memory_space<vmem>>, vector<2x8xf32>,
    return
  }
  func.func @transform_0(%arg0: i32) -> (i32, i32, i32) {
    %c0_i32 = arith.constant 0 : i32
    %c0_i32_0 = arith.constant 0 : i32
    %c0_i32_1 = arith.constant 0 : i32
    return %arg0, %c0_i32, %c0_i32_0 : i32, i32, i32
  }
  func.func @transform_1(%arg0: i32) -> (i32, i32, i32) {
    %c1_i32 = arith.constant 1 : i32
    %c0_i32 = arith.constant 0 : i32
    %c0_i32_0 = arith.constant 0 : i32
    return %c1_i32, %arg0, %c0_i32 : i32, i32, i32
  }
  func.func @transform_2(%arg0: i32) -> (i32, i32) {
    %c0_i32 = arith.constant 0 : i32
    %c0_i32_0 = arith.constant 0 : i32
    return %arg0, %c0_i32 : i32, i32
  }
}

</mosaic_0001>

<llo_original>
// kernel: tpu_custom_call.1
$region0: #{tpu_custom_call.1}
  #allocation0 [shape = 'u32[]', space=smem, size = 0x4, offset = 0x4, fixed_abs, tag = 'smem constant byte address 0x4 - core index']
  #allocation1 [shape = 'u32[72,128]{1,0:T(1,128)}', space=vmem, size = 0x9000, scoped, tag = 'internal scratch']
  %s0 = inlined_call_operand.hbm [shape: f32[2,8,32], index: 0, kind: input, shape index: {}]
  %s1 = inlined_call_operand.hbm [shape: f32[2,2,32], index: 1, kind: input, shape index: {}]
  %s2 = inlined_call_operand.hbm [shape: f32[2,8], index: 2, kind: output, shape index: {}]
  %s3 = sld [smem:[#allocation0]]
  $region26: #{tpu_custom_call.1} parent=0
    _
  %s5 = ssub.s32 1, %s3
  %s6 = scalar_select 0, %s5, %s3
  $region1: #{tpu_custom_call.1} parent=0
    #allocation2 [shape = 'u8[8192]{0}', space=vmem, size = 0x2000, scoped, tag = 'input window, operand 0, single buffered']
    #allocation3 [shape = 's32[1]{0}', space=sflag, size = 0x4, scoped, tag = 'scoped memory for tpu_custom_call.1']
    #allocation4 [shape = 's32[1]{0}', space=sflag, size = 0x4, scoped, tag = 'scoped memory for tpu_custom_call.1']
    #allocation5 [shape = 'u8[1024]{0}', space=vmem, size = 0x400, scoped, tag = 'input window, operand 1, single buffered']
    #allocation6 [shape = 's32[1]{0}', space=sflag, size = 0x4, scoped, tag = 'scoped memory for tpu_custom_call.1']
    #allocation7 [shape = 'u8[1024]{0}', space=vmem, size = 0x400, scoped, tag = 'output window, operand 0, single buffered']
    %7 = vsyncpa [#allocation3], 0
    %8 = vsyncpa [#allocation6], 0
    %9 = vsyncpa [#allocation4], 0
    // Predicated region
    $region2: #{tpu_custom_call.1} parent=1 // pred_check
      _
    $region3: #{tpu_custom_call.1} parent=1 // pred_check_branch
      %11 = sbr.rel (0) target = $region5
    $region4: #{tpu_custom_call.1} parent=1 // pred_region
      %13 = vsyncadd [#allocation3], 0
      %s14 = sshll.u32 %s0, 4
      %s15 = int_to_ptr.hbm [resolvable:$true] %s14
      %s16 = sshll.u32 [#allocation2], 4
      %s17 = int_to_ptr.vmem [resolvable:$true] %s16
      %22 = dma.hbm_to_vmem [thread:$0]  %s15, 256, %s17, [#allocation3], 128, 128, 8
    $region5: #{tpu_custom_call.1} parent=1 // pred_fallthru
      _
    // Predicated region
    $region6: #{tpu_custom_call.1} parent=1 // pred_check
      _
    $region7: #{tpu_custom_call.1} parent=1 // pred_check_branch
      %24 = sbr.rel (0) target = $region9
    $region8: #{tpu_custom_call.1} parent=1 // pred_region
      %26 = vsyncadd [#allocation6], 0
      %s27 = scalar_lea.hbm %s1, 2
      %s29 = sshll.u32 %s27, 4
      %s30 = int_to_ptr.hbm [resolvable:$true] %s29
      %s31 = sshll.u32 [#allocation5], 4
      %s32 = int_to_ptr.vmem [resolvable:$true] %s31
      %34 = dma.hbm_to_vmem [thread:$0]  %s30, 32, %s32, [#allocation6]
    $region9: #{tpu_custom_call.1} parent=1 // pred_fallthru
      _
    // Predicated region
    $region10: #{tpu_custom_call.1} parent=1 // pred_check
      _
    $region11: #{tpu_custom_call.1} parent=1 // pred_check_branch
      %36 = sbr.rel (0) target = $region13
    $region12: #{tpu_custom_call.1} parent=1 // pred_region
      %38 = dma.done [#allocation3], 256
    $region13: #{tpu_custom_call.1} parent=1 // pred_fallthru
      _
    // Predicated region
    $region14: #{tpu_custom_call.1} parent=1 // pred_check
      _
    $region15: #{tpu_custom_call.1} parent=1 // pred_check_branch
      %40 = sbr.rel (0) target = $region17
    $region16: #{tpu_custom_call.1} parent=1 // pred_region
      %42 = dma.done [#allocation6], 32
    $region17: #{tpu_custom_call.1} parent=1 // pred_fallthru
      _
    %v43 = vld [vmem:[#allocation2] sm:$0xff]
    %v44 = vld [vmem:[#allocation2 + $0x8] sm:$0xff]
    %v45 = vld [vmem:[#allocation5] sm:$0x3]
    %v47 = vrot.slane %v45, 1
    %v48 = vperm.slane %v45, 0
    %v49 = vperm.slane %v47, 0
    %v52 = vmul.f32 %v43, %v48
    %v53 = vmul.f32 %v44, %v49
    %vm54 = vcmask 261120
    %v55 = vsel %vm54, %v52, 0.0
    %56 = vadd.xlane.f32.xlu0 %v55
    %v57 = vpop.xlane.xlu0 %56
    %v58 = vsel %vm54, %v53, 0.0
    %59 = vadd.xlane.f32.xlu0 %v58
    %v60 = vpop.xlane.xlu0 %59
    %v63 = vlaneseq
    %v64 = vand.u32 %v63, 127
    %v65 = vperm.slane %v57, %v64
    %v66 = vperm.slane %v60, %v64
    %vm67 = vcmask 1041409
    %v68 = vsel %vm67, %v66, %v65
    %vm70 = vcmask 58368
    %v71 = vsel %vm70, %v68, -inf
    %72 = vmax.xlane.f32.xlu0 %v71
    %v73 = vpop.xlane.xlu0 %72
    %v75 = vperm.slane %v73, 0
    %v76 = vperm.slane %v73, 1
    %v79 = vsub.f32 %v57, %v75
    %v80 = vsub.f32 %v60, %v76
    %v81 = vmul.f32 %v79, 1.442695
    %v82 = vpow.pop %v81
    %v83 = vmul.f32 %v80, 1.442695
    %v84 = vpow.pop %v83
    %87 = vset.pattern.permute.xlu0 0
    %88 = vperm.xlu0 %87, %v82
    %v89 = vpop.permute.xlu0 %88
    %90 = vset.pattern.permute.xlu0 0
    %91 = vperm.xlu0 %90, %v84
    %v92 = vpop.permute.xlu0 %91
    %v93 = vperm.slane %v89, %v64
    %v94 = vperm.slane %v92, %v64
    %v95 = vsel %vm67, %v94, %v93
    %v97 = vsel %vm70, %v95, 0.0
    %98 = vadd.xlane.f32.xlu0 %v97
    %v99 = vpop.xlane.xlu0 %98
    %v100 = vrcp.pop %v99
    %v102 = vperm.slane %v100, 0
    %v103 = vperm.slane %v100, 1
    %v106 = vmul.f32 %v82, %v102
    %v107 = vmul.f32 %v84, %v103
    %110 = vset.pattern.permute.xlu0 0
    %111 = vperm.xlu0 %110, %v106
    %v112 = vpop.permute.xlu0 %111
    %113 = vset.pattern.permute.xlu0 0
    %114 = vperm.xlu0 %113, %v107
    %v115 = vpop.permute.xlu0 %114
    %v116 = vperm.slane %v112, %v64
    %v117 = vperm.slane %v115, %v64
    %v118 = vsel %vm67, %v117, %v116
    %120 = vst.msk [vmem:[#allocation7] sm:$0x3] %vm70, %v118
    // Predicated region
    $region18: #{tpu_custom_call.1} parent=1 // pred_check
      _
    $region19: #{tpu_custom_call.1} parent=1 // pred_check_branch
      %122 = sbr.rel (0) target = $region21
    $region20: #{tpu_custom_call.1} parent=1 // pred_region
      %124 = vsyncadd [#allocation4], 0
      %s126 = sshll.u32 [#allocation7], 4
      %s127 = int_to_ptr.vmem [resolvable:$true] %s126
      %s128 = sshll.u32 %s2, 4
      %s129 = int_to_ptr.hbm [resolvable:$true] %s128
      %131 = dma.vmem_to_hbm [thread:$0]  %s127, 32, %s129, [#allocation4]
    $region21: #{tpu_custom_call.1} parent=1 // pred_fallthru
      _
    // Predicated region
    $region22: #{tpu_custom_call.1} parent=1 // pred_check
      _
    $region23: #{tpu_custom_call.1} parent=1 // pred_check_branch
      %133 = sbr.rel (0) target = $region25
    $region24: #{tpu_custom_call.1} parent=1 // pred_region
      %135 = dma.done [#allocation4], 32
    $region25: #{tpu_custom_call.1} parent=1 // pred_fallthru
      _
    %136 = vsyncpa [#allocation3], 1
    %137 = vsyncpa [#allocation6], 1
    %138 = vsyncpa [#allocation4], 1

</llo_original>
